<compile_context>
chip_gen: v7x
topology: tpu7x:2x2x1
jax: 0.10.0
libtpu: 0.0.40
codegen_flags: <defaults>
</compile_context>

<pallas_src>
import functools

import jax
import jax.numpy as jnp
from jax.experimental import pallas as pl
from jax.experimental.pallas import tpu as pltpu


def _round_up(n, m):
    return ((n + m - 1) // m) * m


def _activation(name, x):
    name = name.lower()
    if name == "tanh":
        return jnp.tanh(x)
    if name == "sigmoid":
        return jax.nn.sigmoid(x)
    # default: relu (matches get_activation fallback)
    return jnp.maximum(x, 0.0)


def _classifier_kernel(x_ref, w1_ref, b1_ref, w2_ref, b2_ref, o_ref, acc_ref,
                       *, act_name):
    k = pl.program_id(0)

    @pl.when(k == 0)
    def _():
        acc_ref[...] = jnp.zeros_like(acc_ref)

    # Partial hidden: x[:, kTK:(k+1)TK] @ W1[kTK:(k+1)TK, :]  (bf16 MXU, f32 acc)
    acc_ref[...] += jnp.dot(x_ref[...], w1_ref[...],
                            preferred_element_type=jnp.float32)

    @pl.when(k == pl.num_programs(0) - 1)
    def _():
        h = acc_ref[...] + b1_ref[...]           # f32 bias add (VPU)
        h = _activation(act_name, h)             # VPU / EUP slot
        # Dropout (eval mode) == identity.
        out = jnp.dot(h.astype(w2_ref.dtype), w2_ref[...],
                      preferred_element_type=jnp.float32)
        out = out + b2_ref[...]
        o_ref[...] = out.astype(o_ref.dtype)


def custom_model_forward(x_nchw, params, dense_activation="relu", tk=512):
    """Forward pass of CustomModel.

    x_nchw : [B, C, H, W] input to the (identity) base_model.
    params : dict with w1 [F, D], b1 [1, D], w2 [D, K], b2 [1, K] (float32).
    """
    b = x_nchw.shape[0]
    # base_model (identity) + nn.Flatten()
    feats = x_nchw.reshape(b, -1)

    # Stream weights/activations as bf16; biases stay f32 (added on f32 acc).
    feats = feats.astype(jnp.bfloat16)
    w1 = params["w1"].astype(jnp.bfloat16)
    w2 = params["w2"].astype(jnp.bfloat16)
    b1 = params["b1"].astype(jnp.float32)
    b2 = params["b2"].astype(jnp.float32)

    B, F = feats.shape
    D = w1.shape[1]
    K = w2.shape[1]

    # Pad to TPU-friendly layout: lanes (128) on last dims, sublanes (16, bf16)
    # on the batch dim; pad F to a multiple of the reduction tile TK.
    B_pad = _round_up(B, 16)
    D_pad = _round_up(D, 128)
    K_pad = _round_up(K, 128)
    TK = min(tk, _round_up(F, 128))
    F_pad = _round_up(F, TK)
    n_k = F_pad // TK

    feats_p = jnp.zeros((B_pad, F_pad), jnp.bfloat16).at[:B, :F].set(feats)
    w1_p = jnp.zeros((F_pad, D_pad), jnp.bfloat16).at[:F, :D].set(w1)
    b1_p = jnp.zeros((1, D_pad), jnp.float32).at[:, :D].set(b1)
    w2_p = jnp.zeros((D_pad, K_pad), jnp.bfloat16).at[:D, :K].set(w2)
    b2_p = jnp.zeros((1, K_pad), jnp.float32).at[:, :K].set(b2)

    kernel = functools.partial(_classifier_kernel, act_name=dense_activation)

    flops = 2 * B_pad * F_pad * D_pad + 2 * B_pad * D_pad * K_pad
    transc = B_pad * D_pad if dense_activation.lower() in ("tanh", "sigmoid") else 0
    bytes_accessed = (feats_p.size * 2 + w1_p.size * 2 + w2_p.size * 2
                      + b1_p.size * 4 + b2_p.size * 4 + B_pad * K_pad * 4)

    out = pl.pallas_call(
        kernel,
        out_shape=jax.ShapeDtypeStruct((B_pad, K_pad), jnp.float32),
        grid_spec=pltpu.PrefetchScalarGridSpec(
            num_scalar_prefetch=0,
            grid=(n_k,),                                   # F reduction, last
            in_specs=[
                pl.BlockSpec((B_pad, TK), lambda k: (0, k)),     # x slice
                pl.BlockSpec((TK, D_pad), lambda k: (k, 0)),     # W1 slice
                pl.BlockSpec((1, D_pad), lambda k: (0, 0)),      # b1 (resident)
                pl.BlockSpec((D_pad, K_pad), lambda k: (0, 0)),  # W2 (resident)
                pl.BlockSpec((1, K_pad), lambda k: (0, 0)),      # b2 (resident)
            ],
            out_specs=pl.BlockSpec((B_pad, K_pad), lambda k: (0, 0)),
            scratch_shapes=[pltpu.VMEM((B_pad, D_pad), jnp.float32)],
        ),
        compiler_params=pltpu.CompilerParams(
            dimension_semantics=("arbitrary",),
            vmem_limit_bytes=32 * 1024 * 1024,   # fits v7x's smaller VMEM too
        ),
        cost_estimate=pl.CostEstimate(
            flops=flops,
            transcendentals=transc,
            bytes_accessed=bytes_accessed),
    )(feats_p, w1_p, b1_p, w2_p, b2_p)

    # Strip batch/class padding.
    return out[:B, :K]


def init_params(key, num_features, dense_layer, num_classes):
    k1, k2, k3, k4 = jax.random.split(key, 4)
    scale1 = 1.0 / jnp.sqrt(num_features)
    scale2 = 1.0 / jnp.sqrt(dense_layer)
    return {
        "w1": jax.random.uniform(k1, (num_features, dense_layer), jnp.float32,
                                 -scale1, scale1),
        "b1": jax.random.uniform(k2, (1, dense_layer), jnp.float32,
                                 -scale1, scale1),
        "w2": jax.random.uniform(k3, (dense_layer, num_classes), jnp.float32,
                                 -scale2, scale2),
        "b2": jax.random.uniform(k4, (1, num_classes), jnp.float32,
                                 -scale2, scale2),
    }


if __name__ == "__main__":
    key = jax.random.PRNGKey(0)
    kx, kp = jax.random.split(key)

    # Small shapes consistent with the module:
    #   base_model output (NCHW) = [2, 4, 16, 16]  ->  num_features = 1024
    B, C, H, W = 2, 4, 16, 16
    num_features = C * H * W          # 1024
    dense_layer = 32
    num_classes = 10
    dense_activation = "relu"

    x = jax.random.normal(kx, (B, C, H, W), jnp.float32)
    params = init_params(kp, num_features, dense_layer, num_classes)

    out = custom_model_forward(x, params, dense_activation)
    out = jax.block_until_ready(out)

    # Pure-JAX reference using the same bf16 weight/activation rounding the
    # kernel streams with (f32 accumulation), so the comparison is apples-to-apples.
    feats_bf = x.reshape(B, -1).astype(jnp.bfloat16)
    w1_bf = params["w1"].astype(jnp.bfloat16)
    w2_bf = params["w2"].astype(jnp.bfloat16)
    h = jnp.dot(feats_bf, w1_bf, preferred_element_type=jnp.float32) + params["b1"]
    h = jnp.maximum(h, 0.0)
    ref = jnp.dot(h.astype(jnp.bfloat16), w2_bf,
                  preferred_element_type=jnp.float32) + params["b2"]

    assert out.shape == (B, num_classes)
    assert jnp.allclose(out, ref, atol=1e-2, rtol=1e-2)

    print("KERNEL_OK")
</pallas_src>

<mosaic_0001>
module attributes {stable_mosaic.version = 11 : i64} {
  func.func @_classifier_kernel(%arg0: i32, %arg1: memref<16x512xbf16, #tpu.memory_space<vmem>>, %arg2: memref<512x128xbf16, #tpu.memory_space<vmem>>, %arg3: memref<1x128xf32, #tpu.memory_space<vmem>>, %arg4: memref<128x128xbf16, #tpu.memory_space<vmem>>, %arg5: memref<1x128xf32, #tpu.memory_space<vmem>>, %arg6: memref<16x128xf32, #tpu.memory_space<vmem>>, %arg7: memref<16x128xf32, #tpu.memory_space<vmem>>) attributes {dimension_semantics = [#tpu.dimension_semantics<arbitrary>], iteration_bounds = array<i64: 2>, scalar_prefetch = 0 : i64, scratch_operands = 1 : i64, tpu.core_type = #tpu.core_type<tc>, window_params = [{transform_indices = @transform_0, window_bounds = array<i64: 16, 512>}, {transform_indices = @transform_1, window_bounds = array<i64: 512, 128>}, {pipeline_mode = #tpu.pipeline_mode<synchronous>, transform_indices = @transform_2, window_bounds = array<i64: 1, 128>}, {pipeline_mode = #tpu.pipeline_mode<synchronous>, transform_indices = @transform_3, window_bounds = array<i64: 128, 128>}, {pipeline_mode = #tpu.pipeline_mode<synchronous>, transform_indices = @transform_4, window_bounds = array<i64: 1, 128>}, {pipeline_mode = #tpu.pipeline_mode<synchronous>, transform_indices = @transform_5, window_bounds = array<i64: 16, 128>}]} {
    %c0_i32 = arith.constant 0 : i32
    %0 = arith.cmpi eq, %arg0, %c0_i32 : i32
    %1 = arith.extui %0 : i1 to i32
    %c0_i32_0 = arith.constant 0 : i32
    %2 = arith.cmpi ne, %1, %c0_i32_0 : i32
    scf.if %2 {
      %cst_9 = arith.constant 0.000000e+00 : f32
      %12 = vector.broadcast %cst_9 : f32 to vector<16x128xf32>
      %c0_10 = arith.constant 0 : index
      %c0_11 = arith.constant 0 : index
      %13 = vector.load %arg7[%c0_10, %c0_11] : memref<16x128xf32, #tpu.memory_space<vmem>>, vector<16x128xf32>
      tpu.vector_store %arg7[%c0_10, %c0_11], %12 {strides = array<i32>} : memref<16x128xf32, #tpu.memory_space<vmem>>, vector<16x128xf32>,
    } else {
    }
    %c0 = arith.constant 0 : index
    %c0_1 = arith.constant 0 : index
    %3 = vector.load %arg7[%c0, %c0_1] : memref<16x128xf32, #tpu.memory_space<vmem>>, vector<16x128xf32>
    %c0_2 = arith.constant 0 : index
    %c0_3 = arith.constant 0 : index
    %4 = vector.load %arg1[%c0_2, %c0_3] : memref<16x512xbf16, #tpu.memory_space<vmem>>, vector<16x512xbf16>
    %c0_4 = arith.constant 0 : index
    %c0_5 = arith.constant 0 : index
    %5 = vector.load %arg2[%c0_4, %c0_5] : memref<512x128xbf16, #tpu.memory_space<vmem>>, vector<512x128xbf16>
    %cst = arith.constant dense<0.000000e+00> : vector<16x128xf32>
    %6 = tpu.matmul %4, %5, %cst {dimension_numbers = #tpu.dot_dimension_numbers<[1], [0], [0], [1], [0, 0, 1, 1], [], []>} : vector<16x512xbf16>, vector<512x128xbf16>, vector<16x128xf32> -> vector<16x128xf32>
    %7 = arith.addf %3, %6 : vector<16x128xf32>
    %c0_6 = arith.constant 0 : index
    %c0_7 = arith.constant 0 : index
    %8 = vector.load %arg7[%c0_6, %c0_7] : memref<16x128xf32, #tpu.memory_space<vmem>>, vector<16x128xf32>
    tpu.vector_store %arg7[%c0_6, %c0_7], %7 {strides = array<i32>} : memref<16x128xf32, #tpu.memory_space<vmem>>, vector<16x128xf32>,
    %c1_i32 = arith.constant 1 : i32
    %9 = arith.cmpi eq, %arg0, %c1_i32 : i32
    %10 = arith.extui %9 : i1 to i32
    %c0_i32_8 = arith.constant 0 : i32
    %11 = arith.cmpi ne, %10, %c0_i32_8 : i32
    scf.if %11 {
      %c0_9 = arith.constant 0 : index
      %c0_10 = arith.constant 0 : index
      %12 = vector.load %arg7[%c0_9, %c0_10] : memref<16x128xf32, #tpu.memory_space<vmem>>, vector<16x128xf32>
      %c0_11 = arith.constant 0 : index
      %c0_12 = arith.constant 0 : index
      %13 = vector.load %arg3[%c0_11, %c0_12] : memref<1x128xf32, #tpu.memory_space<vmem>>, vector<1x128xf32>
      %14 = vector.broadcast %13 : vector<1x128xf32> to vector<16x128xf32>
      %15 = arith.addf %12, %14 : vector<16x128xf32>
      %cst_13 = arith.constant 0.000000e+00 : f32
      %16 = vector.broadcast %cst_13 : f32 to vector<16x128xf32>
      %17 = arith.maximumf %15, %16 : vector<16x128xf32>
      %18 = arith.truncf %17 : vector<16x128xf32> to vector<16x128xbf16>
      %c0_14 = arith.constant 0 : index
      %c0_15 = arith.constant 0 : index
      %19 = vector.load %arg4[%c0_14, %c0_15] : memref<128x128xbf16, #tpu.memory_space<vmem>>, vector<128x128xbf16>
      %cst_16 = arith.constant dense<0.000000e+00> : vector<16x128xf32>
      %20 = tpu.matmul %18, %19, %cst_16 {dimension_numbers = #tpu.dot_dimension_numbers<[1], [0], [0], [1], [0, 0, 1, 1], [], []>} : vector<16x128xbf16>, vector<128x128xbf16>, vector<16x128xf32> -> vector<16x128xf32>
      %c0_17 = arith.constant 0 : index
      %c0_18 = arith.constant 0 : index
      %21 = vector.load %arg5[%c0_17, %c0_18] : memref<1x128xf32, #tpu.memory_space<vmem>>, vector<1x128xf32>
      %22 = vector.broadcast %21 : vector<1x128xf32> to vector<16x128xf32>
      %23 = arith.addf %20, %22 : vector<16x128xf32>
      %c0_19 = arith.constant 0 : index
      %c0_20 = arith.constant 0 : index
      %24 = vector.load %arg6[%c0_19, %c0_20] : memref<16x128xf32, #tpu.memory_space<vmem>>, vector<16x128xf32>
      tpu.vector_store %arg6[%c0_19, %c0_20], %23 {strides = array<i32>} : memref<16x128xf32, #tpu.memory_space<vmem>>, vector<16x128xf32>,
    } else {
    }
    return
  }
  func.func @transform_0(%arg0: i32) -> (i32, i32) {
    %c0_i32 = arith.constant 0 : i32
    %c0_i32_0 = arith.constant 0 : i32
    return %c0_i32, %arg0 : i32, i32
  }
  func.func @transform_1(%arg0: i32) -> (i32, i32) {
    %c0_i32 = arith.constant 0 : i32
    %c0_i32_0 = arith.constant 0 : i32
    return %arg0, %c0_i32 : i32, i32
  }
  func.func @transform_2(%arg0: i32) -> (i32, i32) {
    %c0_i32 = arith.constant 0 : i32
    %c0_i32_0 = arith.constant 0 : i32
    %c0_i32_1 = arith.constant 0 : i32
    return %c0_i32, %c0_i32_0 : i32, i32
  }
  func.func @transform_3(%arg0: i32) -> (i32, i32) {
    %c0_i32 = arith.constant 0 : i32
    %c0_i32_0 = arith.constant 0 : i32
    %c0_i32_1 = arith.constant 0 : i32
    return %c0_i32, %c0_i32_0 : i32, i32
  }
  func.func @transform_4(%arg0: i32) -> (i32, i32) {
    %c0_i32 = arith.constant 0 : i32
    %c0_i32_0 = arith.constant 0 : i32
    %c0_i32_1 = arith.constant 0 : i32
    return %c0_i32, %c0_i32_0 : i32, i32
  }
  func.func @transform_5(%arg0: i32) -> (i32, i32) {
    %c0_i32 = arith.constant 0 : i32
    %c0_i32_0 = arith.constant 0 : i32
    %c0_i32_1 = arith.constant 0 : i32
    return %c0_i32, %c0_i32_0 : i32, i32
  }
}

</mosaic_0001>

<llo_original>
// kernel: tpu_custom_call.1
$region0: #{tpu_custom_call.1}
  #allocation0 [shape = 'u32[]', space=smem, size = 0x4, offset = 0x4, fixed_abs, tag = 'smem constant byte address 0x4 - core index']
  #allocation1 [shape = 'u32[144,128]{1,0:T(1,128)}', space=vmem, size = 0x12000, scoped, tag = 'internal scratch']
  #allocation2 [shape = 'f32[16,128]{1,0:T(8,128)}', space=vmem, size = 0x2000, scoped, tag = 'scratch operand']
  %s0 = inlined_call_operand.hbm [shape: bf16[16,1024], index: 0, kind: input, shape index: {}]
  %s1 = inlined_call_operand.hbm [shape: bf16[1024,128], index: 1, kind: input, shape index: {}]
  %s2 = inlined_call_operand.vmem [shape: f32[1,128], index: 2, kind: input, shape index: {}]
  %s3 = inlined_call_operand.hbm [shape: bf16[128,128], index: 3, kind: input, shape index: {}]
  %s4 = inlined_call_operand.vmem [shape: f32[1,128], index: 4, kind: input, shape index: {}]
  %s5 = inlined_call_operand.hbm [shape: f32[16,128], index: 5, kind: output, shape index: {}]
  %s6 = sld [smem:[#allocation0]]
  $region73: #{tpu_custom_call.1} parent=0
    _
  %s8 = ssub.s32 1, %s6
  %s9 = scalar_select 0, %s8, %s6
  $region1: #{tpu_custom_call.1} parent=0
    #allocation3 [shape = 'u8[32768]{0}', space=vmem, size = 0x8000, scoped, tag = 'input window, operand 0']
    #allocation4 [shape = 's32[2]{0}', space=sflag, size = 0x8, scoped, tag = 'scoped memory for tpu_custom_call.1']
    #allocation5 [shape = 's32[2]{0}', space=sflag, size = 0x8, scoped, tag = 'scoped memory for tpu_custom_call.1']
    #allocation6 [shape = 'u8[262144]{0}', space=vmem, size = 0x40000, scoped, tag = 'input window, operand 1']
    #allocation7 [shape = 's32[2]{0}', space=sflag, size = 0x8, scoped, tag = 'scoped memory for tpu_custom_call.1']
    #allocation8 [shape = 'u8[32768]{0}', space=vmem, size = 0x8000, scoped, tag = 'input window, operand 3, single buffered']
    #allocation9 [shape = 'u8[8192]{0}', space=vmem, size = 0x2000, scoped, tag = 'output window, operand 0, single buffered']
    %10 = vsyncpa [#allocation4], 0
    %s11 = scalar_lea.sflag [#allocation4], 1
    %12 = vsyncpa %s11, 0
    %13 = vsyncpa [#allocation7], 0
    %s14 = scalar_lea.sflag [#allocation7], 1
    %15 = vsyncpa %s14, 0
    %16 = vsyncpa [#allocation5], 0
    loop: start=0, step=1, limit=4
    $region2: #{tpu_custom_call.1} parent=1 // loop_pre_header
      _
    $region3: #{tpu_custom_call.1} parent=1 // loop_header
      %s18 = sphi 0, %s22
      %p19 = scmp.ge.s32.totalorder %s18, 4
      %s28 = sphi 0, %s30
      %s31 = sphi 0, %s28
      %s32 = sphi 0, %s31
      %s48 = sphi 0, %s32
      %s54 = sphi 0, %s56
      %s57 = sphi 0, %s54
      %s58 = sphi 0, %s57
      %s74 = sphi 0, %s58
      %s78 = sphi 0, %s78
      %s80 = sphi 0, %s78
      %s81 = sphi 0, %s80
      %s95 = sphi 0, %s81
      %s99 = sphi 0, %s99
      %s101 = sphi 0, %s99
      %s102 = sphi 0, %s101
      %s116 = sphi 0, %s102
      %s120 = sphi 0, %s120
      %s122 = sphi 0, %s120
      %s123 = sphi 0, %s122
      %s137 = sphi 0, %s123
      %s141 = sphi 0, %s141
      %s143 = sphi 0, %s141
      %s144 = sphi 0, %s143
      %s158 = sphi 0, %s144
    $region4: #{tpu_custom_call.1} parent=1 // loop_header_branch
      %21 = sbr.rel (%p19) target = $region8
    $region5: #{tpu_custom_call.1} parent=1 // loop_body
      %s23 = ssub.s32 %s18, 1
      %s24 = ssub.s32 %s18, 2
      %s25 = sadd.s32 %s18, 1
      %s26 = ssub.s32 %s18, %s25
      %p27 = scmp.eq.s32.totalorder %s26, 0
      %s29 = sadd.s32 %s28, 1
      %s30 = scalar_select %p27, %s28, %s29
      %p33 = pneg %p27
      %p34 = scmp.eq.s32.totalorder %s18, 1
      %p35 = por %p33, %p34
      %p36 = scmp.ne.s32.totalorder %s28, %s31
      %p37 = scmp.eq.s32.totalorder %s18, 0
      %p38 = por %p36, %p37
      %p39 = scmp.ne.s32.totalorder %s28, %s31
      %p40 = scmp.eq.s32.totalorder %s23, 1
      %p41 = por %p39, %p40
      %p42 = scmp.ne.s32.totalorder %s31, %s32
      %p43 = scmp.eq.s32.totalorder %s23, 0
      %p44 = por %p42, %p43
      %p45 = scmp.ne.s32.totalorder %s31, %s32
      %p46 = scmp.eq.s32.totalorder %s24, 1
      %p47 = por %p45, %p46
      %p49 = scmp.ne.s32.totalorder %s32, %s48
      %p50 = scmp.eq.s32.totalorder %s24, 0
      %p51 = por %p49, %p50
      %s52 = ssub.s32 %s18, %s25
      %p53 = scmp.eq.s32.totalorder %s52, 0
      %s55 = sadd.s32 %s54, 1
      %s56 = scalar_select %p53, %s54, %s55
      %p59 = pneg %p53
      %p60 = scmp.eq.s32.totalorder %s18, 1
      %p61 = por %p59, %p60
      %p62 = scmp.ne.s32.totalorder %s54, %s57
      %p63 = scmp.eq.s32.totalorder %s18, 0
      %p64 = por %p62, %p63
      %p65 = scmp.ne.s32.totalorder %s54, %s57
      %p66 = scmp.eq.s32.totalorder %s23, 1
      %p67 = por %p65, %p66
      %p68 = scmp.ne.s32.totalorder %s57, %s58
      %p69 = scmp.eq.s32.totalorder %s23, 0
      %p70 = por %p68, %p69
      %p71 = scmp.ne.s32.totalorder %s57, %s58
      %p72 = scmp.eq.s32.totalorder %s24, 1
      %p73 = por %p71, %p72
      %p75 = scmp.ne.s32.totalorder %s58, %s74
      %p76 = scmp.eq.s32.totalorder %s24, 0
      %p77 = por %p75, %p76
      %s79 = sadd.s32 %s78, 1
      %p82 = scmp.eq.s32.totalorder %s18, 1
      %p83 = scmp.ne.s32.totalorder %s78, %s80
      %p84 = scmp.eq.s32.totalorder %s18, 0
      %p85 = por %p83, %p84
      %p86 = scmp.ne.s32.totalorder %s78, %s80
      %p87 = scmp.eq.s32.totalorder %s23, 1
      %p88 = por %p86, %p87
      %p89 = scmp.ne.s32.totalorder %s80, %s81
      %p90 = scmp.eq.s32.totalorder %s23, 0
      %p91 = por %p89, %p90
      %p92 = scmp.ne.s32.totalorder %s80, %s81
      %p93 = scmp.eq.s32.totalorder %s24, 1
      %p94 = por %p92, %p93
      %p96 = scmp.ne.s32.totalorder %s81, %s95
      %p97 = scmp.eq.s32.totalorder %s24, 0
      %p98 = por %p96, %p97
      %s100 = sadd.s32 %s99, 1
      %p103 = scmp.eq.s32.totalorder %s18, 1
      %p104 = scmp.ne.s32.totalorder %s99, %s101
      %p105 = scmp.eq.s32.totalorder %s18, 0
      %p106 = por %p104, %p105
      %p107 = scmp.ne.s32.totalorder %s99, %s101
      %p108 = scmp.eq.s32.totalorder %s23, 1
      %p109 = por %p107, %p108
      %p110 = scmp.ne.s32.totalorder %s101, %s102
      %p111 = scmp.eq.s32.totalorder %s23, 0
      %p112 = por %p110, %p111
      %p113 = scmp.ne.s32.totalorder %s101, %s102
      %p114 = scmp.eq.s32.totalorder %s24, 1
      %p115 = por %p113, %p114
      %p117 = scmp.ne.s32.totalorder %s102, %s116
      %p118 = scmp.eq.s32.totalorder %s24, 0
      %p119 = por %p117, %p118
      %s121 = sadd.s32 %s120, 1
      %p124 = scmp.eq.s32.totalorder %s18, 1
      %p125 = scmp.ne.s32.totalorder %s120, %s122
      %p126 = scmp.eq.s32.totalorder %s18, 0
      %p127 = por %p125, %p126
      %p128 = scmp.ne.s32.totalorder %s120, %s122
      %p129 = scmp.eq.s32.totalorder %s23, 1
      %p130 = por %p128, %p129
      %p131 = scmp.ne.s32.totalorder %s122, %s123
      %p132 = scmp.eq.s32.totalorder %s23, 0
      %p133 = por %p131, %p132
      %p134 = scmp.ne.s32.totalorder %s122, %s123
      %p135 = scmp.eq.s32.totalorder %s24, 1
      %p136 = por %p134, %p135
      %p138 = scmp.ne.s32.totalorder %s123, %s137
      %p139 = scmp.eq.s32.totalorder %s24, 0
      %p140 = por %p138, %p139
      %s142 = sadd.s32 %s141, 1
      %p145 = scmp.eq.s32.totalorder %s18, 1
      %p146 = scmp.ne.s32.totalorder %s141, %s143
      %p147 = scmp.eq.s32.totalorder %s18, 0
      %p148 = por %p146, %p147
      %p149 = scmp.ne.s32.totalorder %s141, %s143
      %p150 = scmp.eq.s32.totalorder %s23, 1
      %p151 = por %p149, %p150
      %p152 = scmp.ne.s32.totalorder %s143, %s144
      %p153 = scmp.eq.s32.totalorder %s23, 0
      %p154 = por %p152, %p153
      %p155 = scmp.ne.s32.totalorder %s143, %s144
      %p156 = scmp.eq.s32.totalorder %s24, 1
      %p157 = por %p155, %p156
      %p159 = scmp.ne.s32.totalorder %s144, %s158
      %p160 = scmp.eq.s32.totalorder %s24, 0
      %p161 = por %p159, %p160
      %p162 = scmp.le.s32.totalorder 1, %s18
      %p163 = scmp.lt.s32.totalorder %s18, 3
      %p164 = pnand %p162, %p163
      %p165 = pneg %p164
      // Predicated region
      $region9: #{tpu_custom_call.1} parent=5 // pred_check
        _
      $region10: #{tpu_custom_call.1} parent=5 // pred_check_branch
        %167 = sbr.rel (%p164) target = $region12
      $region11: #{tpu_custom_call.1} parent=5 // pred_region
        %s168 = ssub.s32 %s18, 1
        // Predicated region
        $region13: #{tpu_custom_call.1} parent=11 // pred_check
          %p169 = pneg %p91
        $region14: #{tpu_custom_call.1} parent=11 // pred_check_branch
          %171 = sbr.rel (%p169) target = $region16
        $region15: #{tpu_custom_call.1} parent=11 // pred_region
          _
        $region16: #{tpu_custom_call.1} parent=11 // pred_fallthru
          _
        // Predicated region
        $region17: #{tpu_custom_call.1} parent=11 // pred_check
          %p172 = pneg %p112
        $region18: #{tpu_custom_call.1} parent=11 // pred_check_branch
          %174 = sbr.rel (%p172) target = $region20
        $region19: #{tpu_custom_call.1} parent=11 // pred_region
          %s176 = ssub.s32 1024, 1024
          %177 = vsyncadd [#allocation7], %s176
          %s178 = sshll.u32 [#allocation8], 4
          %s179 = int_to_ptr.vmem [resolvable:$true] %s178
          %184 = dma.hbm_to_vmem [thread:$0]  %s3, 1024, %s179, [#allocation7], 64, 64, 4
        $region20: #{tpu_custom_call.1} parent=11 // pred_fallthru
          _
        // Predicated region
        $region21: #{tpu_custom_call.1} parent=11 // pred_check
          %p185 = pneg %p133
        $region22: #{tpu_custom_call.1} parent=11 // pred_check_branch
          %187 = sbr.rel (%p185) target = $region24
        $region23: #{tpu_custom_call.1} parent=11 // pred_region
          _
        $region24: #{tpu_custom_call.1} parent=11 // pred_fallthru
          _
      $region12: #{tpu_custom_call.1} parent=5 // pred_fallthru
        _
      %p188 = scmp.lt.s32.totalorder %s18, 2
      // Predicated region
      $region25: #{tpu_custom_call.1} parent=5 // pred_check
        %p189 = pneg %p188
      $region26: #{tpu_custom_call.1} parent=5 // pred_check_branch
        %191 = sbr.rel (%p189) target = $region28
      $region27: #{tpu_custom_call.1} parent=5 // pred_region
        // Predicated region
        $region29: #{tpu_custom_call.1} parent=27 // pred_check
          %p192 = pneg %p38
        $region30: #{tpu_custom_call.1} parent=27 // pred_check_branch
          %194 = sbr.rel (%p192) target = $region32
        $region31: #{tpu_custom_call.1} parent=27 // pred_region
          %s195 = sand.u32 %s28, 1
          %s196 = scalar_lea.sflag [#allocation4], %s195
          %s197 = sand.u32 %s28, 1
          %s198 = smul.addr %s197, 32
          %s199 = scalar_lea.vmem [#allocation3], %s198
          %s200 = smul.u32 4, %s18
          %s202 = ssub.s32 512, 512
          %203 = vsyncadd %s196, %s202
          %s204 = smul.addr %s200, 64
          %s205 = scalar_lea.hbm %s0, %s204
          %s206 = sshll.u32 %s199, 4
          %s207 = int_to_ptr.vmem [resolvable:$true] %s206
          %212 = dma.hbm_to_vmem [thread:$0]  %s205, 512, %s207, %s196, 512, 256, 16
        $region32: #{tpu_custom_call.1} parent=27 // pred_fallthru
          _
        // Predicated region
        $region33: #{tpu_custom_call.1} parent=27 // pred_check
          %p213 = pneg %p64
        $region34: #{tpu_custom_call.1} parent=27 // pred_check_branch
          %215 = sbr.rel (%p213) target = $region36
        $region35: #{tpu_custom_call.1} parent=27 // pred_region
          %s216 = sand.u32 %s18, 1
          %s217 = scalar_lea.sflag [#allocation7], %s216
          %s218 = sand.u32 %s54, 1
          %s219 = smul.addr %s218, 256
          %s220 = scalar_lea.vmem [#allocation6], %s219
          %s221 = smul.u32 64, %s18
          %s223 = ssub.s32 4096, 4096
          %224 = vsyncadd %s217, %s223
          %s225 = smul.addr %s221, 64
          %s226 = scalar_lea.hbm %s1, %s225
          %s227 = sshll.u32 %s220, 4
          %s228 = int_to_ptr.vmem [resolvable:$true] %s227
          %233 = dma.hbm_to_vmem [thread:$0]  %s226, 4096, %s228, %s217, 64, 64, 4
        $region36: #{tpu_custom_call.1} parent=27 // pred_fallthru
          _
      $region28: #{tpu_custom_call.1} parent=5 // pred_fallthru
        _
      %p234 = scmp.le.s32.totalorder 1, %s18
      %p235 = scmp.lt.s32.totalorder %s18, 3
      %p236 = pnand %p234, %p235
      %p237 = pneg %p236
      // Predicated region
      $region37: #{tpu_custom_call.1} parent=5 // pred_check
        _
      $region38: #{tpu_custom_call.1} parent=5 // pred_check_branch
        %239 = sbr.rel (%p236) target = $region40
      $region39: #{tpu_custom_call.1} parent=5 // pred_region
        %s240 = ssub.s32 %s18, 1
        %s241 = sand.u32 %s31, 1
        %s242 = scalar_lea.sflag [#allocation4], %s241
        %s243 = sand.u32 %s31, 1
        %s244 = smul.addr %s243, 32
        %s245 = scalar_lea.vmem [#allocation3], %s244
        // Predicated region
        $region41: #{tpu_custom_call.1} parent=39 // pred_check
          %p246 = pneg %p44
        $region42: #{tpu_custom_call.1} parent=39 // pred_check_branch
          %248 = sbr.rel (%p246) target = $region44
        $region43: #{tpu_custom_call.1} parent=39 // pred_region
          %249 = dma.done %s242, 512
        $region44: #{tpu_custom_call.1} parent=39 // pred_fallthru
          _
        %s250 = sand.u32 %s23, 1
        %s251 = scalar_lea.sflag [#allocation7], %s250
        %s252 = sand.u32 %s57, 1
        %s253 = smul.addr %s252, 256
        %s254 = scalar_lea.vmem [#allocation6], %s253
        // Predicated region
        $region45: #{tpu_custom_call.1} parent=39 // pred_check
          %p255 = pneg %p70
        $region46: #{tpu_custom_call.1} parent=39 // pred_check_branch
          %257 = sbr.rel (%p255) target = $region48
        $region47: #{tpu_custom_call.1} parent=39 // pred_region
          %258 = dma.done %s251, 4096
        $region48: #{tpu_custom_call.1} parent=39 // pred_fallthru
          _
        // Predicated region
        $region49: #{tpu_custom_call.1} parent=39 // pred_check
          %p259 = pneg %p112
        $region50: #{tpu_custom_call.1} parent=39 // pred_check_branch
          %261 = sbr.rel (%p259) target = $region52
        $region51: #{tpu_custom_call.1} parent=39 // pred_region
          %262 = dma.done [#allocation7], 1024
        $region52: #{tpu_custom_call.1} parent=39 // pred_fallthru
          _
        %s263 = sand.u32 %s31, 1
        %s264 = scalar_lea.sflag [#allocation4], %s263
        %s265 = sand.u32 %s31, 1
        %s266 = smul.addr %s265, 32
        %s267 = scalar_lea.vmem [#allocation3], %s266
        %p268 = pneg %p44
        %p269 = pneg %p41
        %s270 = sand.u32 %s23, 1
        %s271 = scalar_lea.sflag [#allocation7], %s270
        %s272 = sand.u32 %s57, 1
        %s273 = smul.addr %s272, 256
        %s274 = scalar_lea.vmem [#allocation6], %s273
        %p275 = pneg %p70
        %p276 = pneg %p67
        %p277 = pneg %p91
        %p278 = pneg %p88
        %p279 = pneg %p112
        %p280 = pneg %p109
        %p281 = pneg %p133
        %p282 = pneg %p130
        %p283 = pneg %p154
        %p284 = pneg %p151
        %s285 = smul.u32 4, %s23
        %s286 = smul.u32 64, %s23
        %p288 = scmp.eq.s32.totalorder %s23, 0
        // Predicated region
        $region53: #{tpu_custom_call.1} parent=39 // pred_check
          %p289 = pneg %p288
        $region54: #{tpu_custom_call.1} parent=39 // pred_check_branch
          %291 = sbr.rel (%p289) target = $region56
        $region55: #{tpu_custom_call.1} parent=39 // pred_region
          %292 = vst [vmem:[#allocation2] sm:$0xff] 0.0
          %293 = vst [vmem:[#allocation2 + $0x8] sm:$0xff] 0.0
        $region56: #{tpu_custom_call.1} parent=39 // pred_fallthru
          _
        %v294 = vld [vmem:[#allocation2] sm:$0xff]
        %v295 = vld [vmem:[#allocation2 + $0x8] sm:$0xff]
        %v296 = vld [vmem:[%s245] sm:$0xff]
        %v297 = vld [vmem:[%s245 + $0x8] sm:$0xff]
        %v298 = vld [vmem:[%s245 + $0x10] sm:$0xff]
        %v299 = vld [vmem:[%s245 + $0x18] sm:$0xff]
        %v300 = vld [vmem:[%s254] sm:$0xf]
        %v301 = vld [vmem:[%s254 + $0x4] sm:$0xf]
        %v302 = vld [vmem:[%s254 + $0x8] sm:$0xf]
        %v303 = vld [vmem:[%s254 + $0xc] sm:$0xf]
        %v304 = vld [vmem:[%s254 + $0x10] sm:$0xf]
        %v305 = vld [vmem:[%s254 + $0x14] sm:$0xf]
        %v306 = vld [vmem:[%s254 + $0x18] sm:$0xf]
        %v307 = vld [vmem:[%s254 + $0x1c] sm:$0xf]
        %v308 = vld [vmem:[%s254 + $0x20] sm:$0xf]
        %v309 = vld [vmem:[%s254 + $0x24] sm:$0xf]
        %v310 = vld [vmem:[%s254 + $0x28] sm:$0xf]
        %v311 = vld [vmem:[%s254 + $0x2c] sm:$0xf]
        %v312 = vld [vmem:[%s254 + $0x30] sm:$0xf]
        %v313 = vld [vmem:[%s254 + $0x34] sm:$0xf]
        %v314 = vld [vmem:[%s254 + $0x38] sm:$0xf]
        %v315 = vld [vmem:[%s254 + $0x3c] sm:$0xf]
        %v316 = vld [vmem:[%s254 + $0x40] sm:$0xf]
        %v317 = vld [vmem:[%s254 + $0x44] sm:$0xf]
        %v318 = vld [vmem:[%s254 + $0x48] sm:$0xf]
        %v319 = vld [vmem:[%s254 + $0x4c] sm:$0xf]
        %v320 = vld [vmem:[%s254 + $0x50] sm:$0xf]
        %v321 = vld [vmem:[%s254 + $0x54] sm:$0xf]
        %v322 = vld [vmem:[%s254 + $0x58] sm:$0xf]
        %v323 = vld [vmem:[%s254 + $0x5c] sm:$0xf]
        %v324 = vld [vmem:[%s254 + $0x60] sm:$0xf]
        %v325 = vld [vmem:[%s254 + $0x64] sm:$0xf]
        %v326 = vld [vmem:[%s254 + $0x68] sm:$0xf]
        %v327 = vld [vmem:[%s254 + $0x6c] sm:$0xf]
        %v328 = vld [vmem:[%s254 + $0x70] sm:$0xf]
        %v329 = vld [vmem:[%s254 + $0x74] sm:$0xf]
        %v330 = vld [vmem:[%s254 + $0x78] sm:$0xf]
        %v331 = vld [vmem:[%s254 + $0x7c] sm:$0xf]
        %v332 = vld [vmem:[%s254 + $0x80] sm:$0xf]
        %v333 = vld [vmem:[%s254 + $0x84] sm:$0xf]
        %v334 = vld [vmem:[%s254 + $0x88] sm:$0xf]
        %v335 = vld [vmem:[%s254 + $0x8c] sm:$0xf]
        %v336 = vld [vmem:[%s254 + $0x90] sm:$0xf]
        %v337 = vld [vmem:[%s254 + $0x94] sm:$0xf]
        %v338 = vld [vmem:[%s254 + $0x98] sm:$0xf]
        %v339 = vld [vmem:[%s254 + $0x9c] sm:$0xf]
        %v340 = vld [vmem:[%s254 + $0xa0] sm:$0xf]
        %v341 = vld [vmem:[%s254 + $0xa4] sm:$0xf]
        %v342 = vld [vmem:[%s254 + $0xa8] sm:$0xf]
        %v343 = vld [vmem:[%s254 + $0xac] sm:$0xf]
        %v344 = vld [vmem:[%s254 + $0xb0] sm:$0xf]
        %v345 = vld [vmem:[%s254 + $0xb4] sm:$0xf]
        %v346 = vld [vmem:[%s254 + $0xb8] sm:$0xf]
        %v347 = vld [vmem:[%s254 + $0xbc] sm:$0xf]
        %v348 = vld [vmem:[%s254 + $0xc0] sm:$0xf]
        %v349 = vld [vmem:[%s254 + $0xc4] sm:$0xf]
        %v350 = vld [vmem:[%s254 + $0xc8] sm:$0xf]
        %v351 = vld [vmem:[%s254 + $0xcc] sm:$0xf]
        %v352 = vld [vmem:[%s254 + $0xd0] sm:$0xf]
        %v353 = vld [vmem:[%s254 + $0xd4] sm:$0xf]
        %v354 = vld [vmem:[%s254 + $0xd8] sm:$0xf]
        %v355 = vld [vmem:[%s254 + $0xdc] sm:$0xf]
        %v356 = vld [vmem:[%s254 + $0xe0] sm:$0xf]
        %v357 = vld [vmem:[%s254 + $0xe4] sm:$0xf]
        %v358 = vld [vmem:[%s254 + $0xe8] sm:$0xf]
        %v359 = vld [vmem:[%s254 + $0xec] sm:$0xf]
        %v360 = vld [vmem:[%s254 + $0xf0] sm:$0xf]
        %v361 = vld [vmem:[%s254 + $0xf4] sm:$0xf]
        %v362 = vld [vmem:[%s254 + $0xf8] sm:$0xf]
        %v363 = vld [vmem:[%s254 + $0xfc] sm:$0xf]
        %v368 = vunpack.c.l.b16 %v296
        %v369 = vunpack.c.h.b16 %v296
        %v370 = vunpack.c.l.b16 %v297
        %v371 = vunpack.c.h.b16 %v297
        %v372 = vunpack.c.l.b16 %v298
        %v373 = vunpack.c.h.b16 %v298
        %v374 = vunpack.c.l.b16 %v299
        %v375 = vunpack.c.h.b16 %v299
        %v376 = vpack.c.b16 %v372, %v368
        %v377 = vpack.c.b16 %v373, %v369
        %v378 = vpack.c.b16 %v374, %v370
        %v379 = vpack.c.b16 %v375, %v371
        %v448 = vunpack.c.l.b16 %v300
        %v449 = vunpack.c.l.b16 %v301
        %v450 = vunpack.c.l.b16 %v302
        %v451 = vunpack.c.l.b16 %v303
        %v452 = vunpack.c.l.b16 %v304
        %v453 = vunpack.c.l.b16 %v305
        %v454 = vunpack.c.l.b16 %v306
        %v455 = vunpack.c.l.b16 %v307
        %v456 = vunpack.c.l.b16 %v308
        %v457 = vunpack.c.l.b16 %v309
        %v458 = vunpack.c.l.b16 %v310
        %v459 = vunpack.c.l.b16 %v311
        %v460 = vunpack.c.l.b16 %v312
        %v461 = vunpack.c.l.b16 %v313
        %v462 = vunpack.c.l.b16 %v314
        %v463 = vunpack.c.l.b16 %v315
        %v464 = vunpack.c.l.b16 %v316
        %v465 = vunpack.c.l.b16 %v317
        %v466 = vunpack.c.l.b16 %v318
        %v467 = vunpack.c.l.b16 %v319
        %v468 = vunpack.c.l.b16 %v320
        %v469 = vunpack.c.l.b16 %v321
        %v470 = vunpack.c.l.b16 %v322
        %v471 = vunpack.c.l.b16 %v323
        %v472 = vunpack.c.l.b16 %v324
        %v473 = vunpack.c.l.b16 %v325
        %v474 = vunpack.c.l.b16 %v326
        %v475 = vunpack.c.l.b16 %v327
        %v476 = vunpack.c.l.b16 %v328
        %v477 = vunpack.c.l.b16 %v329
        %v478 = vunpack.c.l.b16 %v330
        %v479 = vunpack.c.l.b16 %v331
        %v480 = vunpack.c.l.b16 %v332
        %v481 = vunpack.c.l.b16 %v333
        %v482 = vunpack.c.l.b16 %v334
        %v483 = vunpack.c.l.b16 %v335
        %v484 = vunpack.c.l.b16 %v336
        %v485 = vunpack.c.l.b16 %v337
        %v486 = vunpack.c.l.b16 %v338
        %v487 = vunpack.c.l.b16 %v339
        %v488 = vunpack.c.l.b16 %v340
        %v489 = vunpack.c.l.b16 %v341
        %v490 = vunpack.c.l.b16 %v342
        %v491 = vunpack.c.l.b16 %v343
        %v492 = vunpack.c.l.b16 %v344
        %v493 = vunpack.c.l.b16 %v345
        %v494 = vunpack.c.l.b16 %v346
        %v495 = vunpack.c.l.b16 %v347
        %v496 = vunpack.c.l.b16 %v348
        %v497 = vunpack.c.l.b16 %v349
        %v498 = vunpack.c.l.b16 %v350
        %v499 = vunpack.c.l.b16 %v351
        %v500 = vunpack.c.l.b16 %v352
        %v501 = vunpack.c.l.b16 %v353
        %v502 = vunpack.c.l.b16 %v354
        %v503 = vunpack.c.l.b16 %v355
        %v504 = vunpack.c.l.b16 %v356
        %v505 = vunpack.c.l.b16 %v357
        %v506 = vunpack.c.l.b16 %v358
        %v507 = vunpack.c.l.b16 %v359
        %v508 = vunpack.c.l.b16 %v360
        %v509 = vunpack.c.l.b16 %v361
        %v510 = vunpack.c.l.b16 %v362
        %v511 = vunpack.c.l.b16 %v363
        %v512 = vpack.c.b16 %v449, %v448
        %v513 = vpack.c.b16 %v451, %v450
        %v514 = vpack.c.b16 %v453, %v452
        %v515 = vpack.c.b16 %v455, %v454
        %v516 = vpack.c.b16 %v457, %v456
        %v517 = vpack.c.b16 %v459, %v458
        %v518 = vpack.c.b16 %v461, %v460
        %v519 = vpack.c.b16 %v463, %v462
        %v520 = vpack.c.b16 %v465, %v464
        %v521 = vpack.c.b16 %v467, %v466
        %v522 = vpack.c.b16 %v469, %v468
        %v523 = vpack.c.b16 %v471, %v470
        %v524 = vpack.c.b16 %v473, %v472
        %v525 = vpack.c.b16 %v475, %v474
        %v526 = vpack.c.b16 %v477, %v476
        %v527 = vpack.c.b16 %v479, %v478
        %v528 = vpack.c.b16 %v481, %v480
        %v529 = vpack.c.b16 %v483, %v482
        %v530 = vpack.c.b16 %v485, %v484
        %v531 = vpack.c.b16 %v487, %v486
        %v532 = vpack.c.b16 %v489, %v488
        %v533 = vpack.c.b16 %v491, %v490
        %v534 = vpack.c.b16 %v493, %v492
        %v535 = vpack.c.b16 %v495, %v494
        %v536 = vpack.c.b16 %v497, %v496
        %v537 = vpack.c.b16 %v499, %v498
        %v538 = vpack.c.b16 %v501, %v500
        %v539 = vpack.c.b16 %v503, %v502
        %v540 = vpack.c.b16 %v505, %v504
        %v541 = vpack.c.b16 %v507, %v506
        %v542 = vpack.c.b16 %v509, %v508
        %v543 = vpack.c.b16 %v511, %v510
        %576 = vmatprep.subr.bf16.mxu0 0
        %577 = vmatpush1.bf16.msra.mxu0 %v512
        %578 = vmatprep.subr.bf16.mxu0 0
        %579 = vmatpush1.bf16.msra.mxu0 %v513
        %580 = vmatprep.subr.bf16.mxu0 0
        %581 = vmatpush1.bf16.msra.mxu0 %v514
        %582 = vmatprep.subr.bf16.mxu0 0
        %583 = vmatpush1.bf16.msra.mxu0 %v515
        %584 = vmatprep.subr.bf16.mxu0 0
        %585 = vmatpush1.bf16.msra.mxu0 %v516
        %586 = vmatprep.subr.bf16.mxu0 0
        %587 = vmatpush1.bf16.msra.mxu0 %v517
        %588 = vmatprep.subr.bf16.mxu0 0
        %589 = vmatpush1.bf16.msra.mxu0 %v518
        %590 = vmatprep.subr.bf16.mxu0 0
        %591 = vmatpush1.bf16.msra.mxu0 %v519
        %592 = vmatprep.subr.bf16.mxu0 0
        %593 = vmatpush1.bf16.msra.mxu0 %v520
        %594 = vmatprep.subr.bf16.mxu0 0
        %595 = vmatpush1.bf16.msra.mxu0 %v521
        %596 = vmatprep.subr.bf16.mxu0 0
        %597 = vmatpush1.bf16.msra.mxu0 %v522
        %598 = vmatprep.subr.bf16.mxu0 0
        %599 = vmatpush1.bf16.msra.mxu0 %v523
        %600 = vmatprep.subr.bf16.mxu0 0
        %601 = vmatpush1.bf16.msra.mxu0 %v524
        %602 = vmatprep.subr.bf16.mxu0 0
        %603 = vmatpush1.bf16.msra.mxu0 %v525
        %604 = vmatprep.subr.bf16.mxu0 0
        %605 = vmatpush1.bf16.msra.mxu0 %v526
        %606 = vmatprep.subr.bf16.mxu0 0
        %607 = vmatpush1.bf16.msra.mxu0 %v527
        %608 = vmatprep.mubr.bf16.mxu0 %v377
        %609 = vmatmul.mubr.bf16.gmra.mrb[0].mxu0 %v376
        %v610 = vpop.f32.mrb[0].mxu0
        %v611 = vadd.f32 0.0, %v610
        %v612 = vpop.f32.mrb[0].mxu0
        %v613 = vpop.f32.mrb[0].mxu0
        %v614 = vadd.f32 0.0, %v613
        %v615 = vpop.f32.mrb[0].mxu0
        %616 = vdwg.mxu0
        %617 = vmatprep.subr.bf16.mxu0 0
        %618 = vmatpush1.bf16.msra.mxu0 %v528
        %619 = vmatprep.subr.bf16.mxu0 0
        %620 = vmatpush1.bf16.msra.mxu0 %v529
        %621 = vmatprep.subr.bf16.mxu0 0
        %622 = vmatpush1.bf16.msra.mxu0 %v530
        %623 = vmatprep.subr.bf16.mxu0 0
        %624 = vmatpush1.bf16.msra.mxu0 %v531
        %625 = vmatprep.subr.bf16.mxu0 0
        %626 = vmatpush1.bf16.msra.mxu0 %v532
        %627 = vmatprep.subr.bf16.mxu0 0
        %628 = vmatpush1.bf16.msra.mxu0 %v533
        %629 = vmatprep.subr.bf16.mxu0 0
        %630 = vmatpush1.bf16.msra.mxu0 %v534
        %631 = vmatprep.subr.bf16.mxu0 0
        %632 = vmatpush1.bf16.msra.mxu0 %v535
        %633 = vmatprep.subr.bf16.mxu0 0
        %634 = vmatpush1.bf16.msra.mxu0 %v536
        %635 = vmatprep.subr.bf16.mxu0 0
        %636 = vmatpush1.bf16.msra.mxu0 %v537
        %637 = vmatprep.subr.bf16.mxu0 0
        %638 = vmatpush1.bf16.msra.mxu0 %v538
        %639 = vmatprep.subr.bf16.mxu0 0
        %640 = vmatpush1.bf16.msra.mxu0 %v539
        %641 = vmatprep.subr.bf16.mxu0 0
        %642 = vmatpush1.bf16.msra.mxu0 %v540
        %643 = vmatprep.subr.bf16.mxu0 0
        %644 = vmatpush1.bf16.msra.mxu0 %v541
        %645 = vmatprep.subr.bf16.mxu0 0
        %646 = vmatpush1.bf16.msra.mxu0 %v542
        %647 = vmatprep.subr.bf16.mxu0 0
        %648 = vmatpush1.bf16.msra.mxu0 %v543
        %649 = vmatprep.mubr.bf16.mxu0 %v379
        %650 = vmatmul.mubr.bf16.gmra.mrb[0].mxu0 %v378
        %v651 = vpop.f32.mrb[0].mxu0
        %v652 = vadd.f32 %v611, %v651
        %v653 = vpop.f32.mrb[0].mxu0
        %v654 = vpop.f32.mrb[0].mxu0
        %v655 = vadd.f32 %v614, %v654
        %v656 = vpop.f32.mrb[0].mxu0
        %657 = vdwg.mxu0
        %v658 = vadd.f32 %v294, %v652
        %v659 = vadd.f32 %v295, %v655
        %660 = vst [vmem:[#allocation2] sm:$0xff] %v658
        %661 = vst [vmem:[#allocation2 + $0x8] sm:$0xff] %v659
        %p662 = scmp.eq.s32.totalorder %s23, 1
        // Predicated region
        $region57: #{tpu_custom_call.1} parent=39 // pred_check
          %p663 = pneg %p662
        $region58: #{tpu_custom_call.1} parent=39 // pred_check_branch
          %665 = sbr.rel (%p663) target = $region60
        $region59: #{tpu_custom_call.1} parent=39 // pred_region
          %v666 = vld [vmem:[#allocation2] sm:$0xff]
          %v667 = vld [vmem:[#allocation2 + $0x8] sm:$0xff]
          %v668 = vld [vmem:[%s2] sm:$0x1]
          %v670 = vlaneseq
          %v671 = vshrl.u32 %v670, 7
          %v672 = vsub.s32 0, %v671
          %v673 = vrot.slane %v668, %v672
          %v675 = vadd.f32 %v666, %v673
          %v676 = vadd.f32 %v667, %v673
          %v677 = vmax.f32 %v675, 0.0
          %v678 = vmax.f32 %v676, 0.0
          %v679 = vpack.c.bf16 %v678, %v677
          %v680 = vld [vmem:[#allocation8] sm:$0xf]
          %v681 = vld [vmem:[#allocation8 + $0x4] sm:$0xf]
          %v682 = vld [vmem:[#allocation8 + $0x8] sm:$0xf]
          %v683 = vld [vmem:[#allocation8 + $0xc] sm:$0xf]
          %v684 = vld [vmem:[#allocation8 + $0x10] sm:$0xf]
          %v685 = vld [vmem:[#allocation8 + $0x14] sm:$0xf]
          %v686 = vld [vmem:[#allocation8 + $0x18] sm:$0xf]
          %v687 = vld [vmem:[#allocation8 + $0x1c] sm:$0xf]
          %v688 = vld [vmem:[#allocation8 + $0x20] sm:$0xf]
          %v689 = vld [vmem:[#allocation8 + $0x24] sm:$0xf]
          %v690 = vld [vmem:[#allocation8 + $0x28] sm:$0xf]
          %v691 = vld [vmem:[#allocation8 + $0x2c] sm:$0xf]
          %v692 = vld [vmem:[#allocation8 + $0x30] sm:$0xf]
          %v693 = vld [vmem:[#allocation8 + $0x34] sm:$0xf]
          %v694 = vld [vmem:[#allocation8 + $0x38] sm:$0xf]
          %v695 = vld [vmem:[#allocation8 + $0x3c] sm:$0xf]
          %v696 = vld [vmem:[%s4] sm:$0x1]
          %v698 = vlaneseq
          %v699 = vshrl.u32 %v698, 7
          %v700 = vsub.s32 0, %v699
          %v701 = vrot.slane %v696, %v700
          %v719 = vunpack.c.l.b16 %v680
          %v720 = vunpack.c.l.b16 %v681
          %v721 = vunpack.c.l.b16 %v682
          %v722 = vunpack.c.l.b16 %v683
          %v723 = vunpack.c.l.b16 %v684
          %v724 = vunpack.c.l.b16 %v685
          %v725 = vunpack.c.l.b16 %v686
          %v726 = vunpack.c.l.b16 %v687
          %v727 = vunpack.c.l.b16 %v688
          %v728 = vunpack.c.l.b16 %v689
          %v729 = vunpack.c.l.b16 %v690
          %v730 = vunpack.c.l.b16 %v691
          %v731 = vunpack.c.l.b16 %v692
          %v732 = vunpack.c.l.b16 %v693
          %v733 = vunpack.c.l.b16 %v694
          %v734 = vunpack.c.l.b16 %v695
          %v735 = vpack.c.b16 %v720, %v719
          %v736 = vpack.c.b16 %v722, %v721
          %v737 = vpack.c.b16 %v724, %v723
          %v738 = vpack.c.b16 %v726, %v725
          %v739 = vpack.c.b16 %v728, %v727
          %v740 = vpack.c.b16 %v730, %v729
          %v741 = vpack.c.b16 %v732, %v731
          %v742 = vpack.c.b16 %v734, %v733
          %751 = vmatprep.subr.bf16.mxu0 0
          %752 = vmatpush1.bf16.msra.mxu0 %v735
          %753 = vmatprep.subr.bf16.mxu0 0
          %754 = vmatpush1.bf16.msra.mxu0 %v736
          %755 = vmatprep.subr.bf16.mxu0 0
          %756 = vmatpush1.bf16.msra.mxu0 %v737
          %757 = vmatprep.subr.bf16.mxu0 0
          %758 = vmatpush1.bf16.msra.mxu0 %v738
          %759 = vmatprep.subr.bf16.mxu0 0
          %760 = vmatpush1.bf16.msra.mxu0 %v739
          %761 = vmatprep.subr.bf16.mxu0 0
          %762 = vmatpush1.bf16.msra.mxu0 %v740
          %763 = vmatprep.subr.bf16.mxu0 0
          %764 = vmatpush1.bf16.msra.mxu0 %v741
          %765 = vmatprep.subr.bf16.mxu0 0
          %766 = vmatpush1.bf16.msra.mxu0 %v742
          %767 = vmatprep.subr.bf16.mxu0 0
          %768 = vmatpush1.bf16.msra.mxu0 0
          %769 = vmatprep.subr.bf16.mxu0 0
          %770 = vmatpush1.bf16.msra.mxu0 0
          %771 = vmatprep.subr.bf16.mxu0 0
          %772 = vmatpush1.bf16.msra.mxu0 0
          %773 = vmatprep.subr.bf16.mxu0 0
          %774 = vmatpush1.bf16.msra.mxu0 0
          %775 = vmatprep.subr.bf16.mxu0 0
          %776 = vmatpush1.bf16.msra.mxu0 0
          %777 = vmatprep.subr.bf16.mxu0 0
          %778 = vmatpush1.bf16.msra.mxu0 0
          %779 = vmatprep.subr.bf16.mxu0 0
          %780 = vmatpush1.bf16.msra.mxu0 0
          %781 = vmatprep.subr.bf16.mxu0 0
          %782 = vmatpush1.bf16.msra.mxu0 0
          %783 = vmatprep.mubr.bf16.mxu0 0
          %784 = vmatmul.mubr.bf16.gmra.mrb[0].mxu0 %v679
          %v785 = vpop.f32.mrb[0].mxu0
          %v786 = vadd.f32 %v701, %v785
          %v787 = vpop.f32.mrb[0].mxu0
          %v788 = vpop.f32.mrb[0].mxu0
          %v789 = vadd.f32 %v701, %v788
          %v790 = vpop.f32.mrb[0].mxu0
          %791 = vdwg.mxu0
          %792 = vst [vmem:[#allocation9] sm:$0xff] %v786
          %793 = vst [vmem:[#allocation9 + $0x8] sm:$0xff] %v789
        $region60: #{tpu_custom_call.1} parent=39 // pred_fallthru
          _
        // Predicated region
        $region61: #{tpu_custom_call.1} parent=39 // pred_check
          %p794 = pneg %p151
        $region62: #{tpu_custom_call.1} parent=39 // pred_check_branch
          %796 = sbr.rel (%p794) target = $region64
        $region63: #{tpu_custom_call.1} parent=39 // pred_region
          %s798 = ssub.s32 256, 256
          %799 = vsyncadd [#allocation5], %s798
          %s800 = sshll.u32 [#allocation9], 4
          %s801 = int_to_ptr.vmem [resolvable:$true] %s800
          %806 = dma.vmem_to_hbm [thread:$0]  %s801, 256, %s5, [#allocation5], 128, 128, 8
        $region64: #{tpu_custom_call.1} parent=39 // pred_fallthru
          _
        // Predicated region
        $region65: #{tpu_custom_call.1} parent=39 // pred_check
          %p807 = pneg %p151
        $region66: #{tpu_custom_call.1} parent=39 // pred_check_branch
          %809 = sbr.rel (%p807) target = $region68
        $region67: #{tpu_custom_call.1} parent=39 // pred_region
          %810 = dma.done [#allocation5], 256
        $region68: #{tpu_custom_call.1} parent=39 // pred_fallthru
          _
      $region40: #{tpu_custom_call.1} parent=5 // pred_fallthru
        _
      %p811 = scmp.le.s32.totalorder 2, %s18
      // Predicated region
      $region69: #{tpu_custom_call.1} parent=5 // pred_check
        %p812 = pneg %p811
      $region70: #{tpu_custom_call.1} parent=5 // pred_check_branch
        %814 = sbr.rel (%p812) target = $region72
      $region71: #{tpu_custom_call.1} parent=5 // pred_region
        %s815 = ssub.s32 %s18, 2
      $region72: #{tpu_custom_call.1} parent=5 // pred_fallthru
        _
    $region6: #{tpu_custom_call.1} parent=1 // loop_footer
      %s22 = sadd.s32 1, %s18
    $region7: #{tpu_custom_call.1} parent=1 // loop_footer_branch
      %17 = sbr.rel target = $region3
    $region8: #{tpu_custom_call.1} parent=1 // loop_exit
      _
    %816 = vsyncpa [#allocation4], 1
    %s817 = scalar_lea.sflag [#allocation4], 1
    %818 = vsyncpa %s817, 1
    %819 = vsyncpa [#allocation7], 1
    %s820 = scalar_lea.sflag [#allocation7], 1
    %821 = vsyncpa %s820, 1
    %822 = vsyncpa [#allocation5], 1
    %s823 = scalar_lea.sflag [#allocation5], 1
    %824 = vsyncpa %s823, 1

</llo_original>
